<compile_context>
chip_gen: v5e
topology: v5e:2x2
jax: 0.10.0
libtpu: 0.0.40
codegen_flags: <defaults>
</compile_context>

<pallas_src>
import jax
import jax.numpy as jnp
from jax.experimental import pallas as pl
from jax.experimental.pallas import tpu as pltpu

IN_F, H1, H2, OUT_F = 8, 5, 3, 1   # feature sizes of the PyTorch module
TILE_B = 128                        # batch (lane) tile per grid step


def mlp_kernel(x_ref, w1_ref, b1_ref, w2_ref, b2_ref, w3_ref, b3_ref, o_ref):
    # x_ref: (IN_F, TILE_B) VMEM tile, batch on lanes.
    # w*/b* refs: SMEM; weights stored (in, out) (transpose of PyTorch's (out, in)).
    x = x_ref[...]                                    # one (8, 128) f32 tile

    # Layer 1: 8 -> 5, unrolled VPU multiply-adds + ReLU.
    h1 = []
    for j in range(H1):
        acc = w1_ref[0, j] * x[0:1, :]
        for k in range(1, IN_F):
            acc = acc + w1_ref[k, j] * x[k:k + 1, :]
        h1.append(jnp.maximum(acc + b1_ref[j], 0.0))  # (1, TILE_B)

    # Layer 2: 5 -> 3, unrolled VPU multiply-adds + ReLU.
    h2 = []
    for j in range(H2):
        acc = w2_ref[0, j] * h1[0]
        for k in range(1, H1):
            acc = acc + w2_ref[k, j] * h1[k]
        h2.append(jnp.maximum(acc + b2_ref[j], 0.0))  # (1, TILE_B)

    # Layer 3: 3 -> 1 + sigmoid (exp and approx reciprocal both go to the EUP).
    z = w3_ref[0, 0] * h2[0]
    for k in range(1, H2):
        z = z + w3_ref[k, 0] * h2[k]
    z = z + b3_ref[0]
    o_ref[...] = pl.reciprocal(1.0 + jnp.exp(-z), approx=True)


def mlp_forward(x, w1, b1, w2, b2, w3, b3, *, tile_b=TILE_B):
    """x: (B, 8) row-major (PyTorch layout). Returns (B, 1)."""
    B, in_f = x.shape
    assert in_f == IN_F
    # Pad the batch up to a multiple of the lane tile and transpose so batch
    # maps to the 128-lane axis.
    b_pad = pl.cdiv(B, tile_b) * tile_b
    x_t = jnp.zeros((IN_F, b_pad), jnp.float32).at[:, :B].set(x.T)

    smem = pl.BlockSpec(memory_space=pltpu.MemorySpace.SMEM)
    y_t = pl.pallas_call(
        mlp_kernel,
        out_shape=jax.ShapeDtypeStruct((1, b_pad), jnp.float32),
        grid_spec=pltpu.PrefetchScalarGridSpec(
            num_scalar_prefetch=0,
            grid=(b_pad // tile_b,),
            in_specs=[
                pl.BlockSpec((IN_F, tile_b), lambda i: (0, i)),   # x^T tile
                smem, smem, smem, smem, smem, smem,               # weights/biases
            ],
            out_specs=pl.BlockSpec((1, tile_b), lambda i: (0, i)),
        ),
        compiler_params=pltpu.CompilerParams(
            dimension_semantics=("parallel",),   # batch tiles shard across TCs (v7x)
        ),
    )(x_t, w1, b1, w2, b2, w3, b3)
    return y_t[:, :B].T                          # back to PyTorch layout (B, 1)


def init_linear(key, fan_in, fan_out):
    # Mimics PyTorch's default U(-1/sqrt(fan_in), 1/sqrt(fan_in)) init.
    # Weight stored (in, out) = transpose of PyTorch's (out, in); bias (out,).
    kw, kb = jax.random.split(key)
    bound = 1.0 / jnp.sqrt(fan_in)
    w = jax.random.uniform(kw, (fan_in, fan_out), jnp.float32, -bound, bound)
    b = jax.random.uniform(kb, (fan_out,), jnp.float32, -bound, bound)
    return w, b


def reference_forward(x, w1, b1, w2, b2, w3, b3):
    h1 = jnp.maximum(x @ w1 + b1, 0.0)
    h2 = jnp.maximum(h1 @ w2 + b2, 0.0)
    return jax.nn.sigmoid(h2 @ w3 + b3)


if __name__ == "__main__":
    key = jax.random.PRNGKey(0)
    kx, k1, k2, k3 = jax.random.split(key, 4)

    B = 256                                      # two lane-dense grid steps
    x = jax.random.normal(kx, (B, IN_F), jnp.float32)

    w1, b1 = init_linear(k1, IN_F, H1)
    w2, b2 = init_linear(k2, H1, H2)
    w3, b3 = init_linear(k3, H2, OUT_F)

    y = mlp_forward(x, w1, b1, w2, b2, w3, b3)
    jax.block_until_ready(y)

    y_ref = reference_forward(x, w1, b1, w2, b2, w3, b3)
    assert y.shape == (B, OUT_F)
    max_err = float(jnp.max(jnp.abs(y - y_ref)))
    # Approx (EUP) reciprocal in the sigmoid -> slightly looser tolerance.
    assert max_err < 2e-3, max_err

    print("KERNEL_OK")
</pallas_src>

<mosaic_0001>
module attributes {stable_mosaic.version = 11 : i64} {
  func.func @mlp_kernel(%arg0: i32, %arg1: memref<8x128xf32, #tpu.memory_space<vmem>>, %arg2: memref<8x5xf32, #tpu.memory_space<smem>>, %arg3: memref<5xf32, #tpu.memory_space<smem>>, %arg4: memref<5x3xf32, #tpu.memory_space<smem>>, %arg5: memref<3xf32, #tpu.memory_space<smem>>, %arg6: memref<3x1xf32, #tpu.memory_space<smem>>, %arg7: memref<1xf32, #tpu.memory_space<smem>>, %arg8: memref<1x128xf32, #tpu.memory_space<vmem>>) attributes {dimension_semantics = [#tpu.dimension_semantics<parallel>], iteration_bounds = array<i64: 2>, scalar_prefetch = 0 : i64, scratch_operands = 0 : i64, tpu.core_type = #tpu.core_type<tc>, window_params = [{transform_indices = @transform_0, window_bounds = array<i64: 8, 128>}, {transform_indices = @transform_1, window_bounds = array<i64: 8, 5>}, {transform_indices = @transform_2, window_bounds = array<i64: 5>}, {transform_indices = @transform_3, window_bounds = array<i64: 5, 3>}, {transform_indices = @transform_4, window_bounds = array<i64: 3>}, {transform_indices = @transform_5, window_bounds = array<i64: 3, 1>}, {transform_indices = @transform_6, window_bounds = array<i64: 1>}, {transform_indices = @transform_7, window_bounds = array<i64: 1, 128>}]} {
    %c0 = arith.constant 0 : index
    %c0_0 = arith.constant 0 : index
    %0 = vector.load %arg1[%c0, %c0_0] : memref<8x128xf32, #tpu.memory_space<vmem>>, vector<8x128xf32>
    %c0_1 = arith.constant 0 : index
    %c0_2 = arith.constant 0 : index
    %1 = memref.load %arg2[%c0_1, %c0_2] : memref<8x5xf32, #tpu.memory_space<smem>>
    %2 = vector.extract_strided_slice %0 {offsets = [0, 0], sizes = [1, 128], strides = [1, 1]} : vector<8x128xf32> to vector<1x128xf32>
    %3 = vector.broadcast %1 : f32 to vector<1x128xf32>
    %4 = arith.mulf %3, %2 : vector<1x128xf32>
    %c1 = arith.constant 1 : index
    %c0_3 = arith.constant 0 : index
    %5 = memref.load %arg2[%c1, %c0_3] : memref<8x5xf32, #tpu.memory_space<smem>>
    %6 = vector.extract_strided_slice %0 {offsets = [1, 0], sizes = [1, 128], strides = [1, 1]} : vector<8x128xf32> to vector<1x128xf32>
    %7 = vector.broadcast %5 : f32 to vector<1x128xf32>
    %8 = arith.mulf %7, %6 : vector<1x128xf32>
    %9 = arith.addf %4, %8 : vector<1x128xf32>
    %c2 = arith.constant 2 : index
    %c0_4 = arith.constant 0 : index
    %10 = memref.load %arg2[%c2, %c0_4] : memref<8x5xf32, #tpu.memory_space<smem>>
    %11 = vector.extract_strided_slice %0 {offsets = [2, 0], sizes = [1, 128], strides = [1, 1]} : vector<8x128xf32> to vector<1x128xf32>
    %12 = vector.broadcast %10 : f32 to vector<1x128xf32>
    %13 = arith.mulf %12, %11 : vector<1x128xf32>
    %14 = arith.addf %9, %13 : vector<1x128xf32>
    %c3 = arith.constant 3 : index
    %c0_5 = arith.constant 0 : index
    %15 = memref.load %arg2[%c3, %c0_5] : memref<8x5xf32, #tpu.memory_space<smem>>
    %16 = vector.extract_strided_slice %0 {offsets = [3, 0], sizes = [1, 128], strides = [1, 1]} : vector<8x128xf32> to vector<1x128xf32>
    %17 = vector.broadcast %15 : f32 to vector<1x128xf32>
    %18 = arith.mulf %17, %16 : vector<1x128xf32>
    %19 = arith.addf %14, %18 : vector<1x128xf32>
    %c4 = arith.constant 4 : index
    %c0_6 = arith.constant 0 : index
    %20 = memref.load %arg2[%c4, %c0_6] : memref<8x5xf32, #tpu.memory_space<smem>>
    %21 = vector.extract_strided_slice %0 {offsets = [4, 0], sizes = [1, 128], strides = [1, 1]} : vector<8x128xf32> to vector<1x128xf32>
    %22 = vector.broadcast %20 : f32 to vector<1x128xf32>
    %23 = arith.mulf %22, %21 : vector<1x128xf32>
    %24 = arith.addf %19, %23 : vector<1x128xf32>
    %c5 = arith.constant 5 : index
    %c0_7 = arith.constant 0 : index
    %25 = memref.load %arg2[%c5, %c0_7] : memref<8x5xf32, #tpu.memory_space<smem>>
    %26 = vector.extract_strided_slice %0 {offsets = [5, 0], sizes = [1, 128], strides = [1, 1]} : vector<8x128xf32> to vector<1x128xf32>
    %27 = vector.broadcast %25 : f32 to vector<1x128xf32>
    %28 = arith.mulf %27, %26 : vector<1x128xf32>
    %29 = arith.addf %24, %28 : vector<1x128xf32>
    %c6 = arith.constant 6 : index
    %c0_8 = arith.constant 0 : index
    %30 = memref.load %arg2[%c6, %c0_8] : memref<8x5xf32, #tpu.memory_space<smem>>
    %31 = vector.extract_strided_slice %0 {offsets = [6, 0], sizes = [1, 128], strides = [1, 1]} : vector<8x128xf32> to vector<1x128xf32>
    %32 = vector.broadcast %30 : f32 to vector<1x128xf32>
    %33 = arith.mulf %32, %31 : vector<1x128xf32>
    %34 = arith.addf %29, %33 : vector<1x128xf32>
    %c7 = arith.constant 7 : index
    %c0_9 = arith.constant 0 : index
    %35 = memref.load %arg2[%c7, %c0_9] : memref<8x5xf32, #tpu.memory_space<smem>>
    %36 = vector.extract_strided_slice %0 {offsets = [7, 0], sizes = [1, 128], strides = [1, 1]} : vector<8x128xf32> to vector<1x128xf32>
    %37 = vector.broadcast %35 : f32 to vector<1x128xf32>
    %38 = arith.mulf %37, %36 : vector<1x128xf32>
    %39 = arith.addf %34, %38 : vector<1x128xf32>
    %c0_10 = arith.constant 0 : index
    %40 = memref.load %arg3[%c0_10] : memref<5xf32, #tpu.memory_space<smem>>
    %41 = vector.broadcast %40 : f32 to vector<1x128xf32>
    %42 = arith.addf %39, %41 : vector<1x128xf32>
    %cst = arith.constant 0.000000e+00 : f32
    %43 = vector.broadcast %cst : f32 to vector<1x128xf32>
    %44 = arith.maximumf %42, %43 : vector<1x128xf32>
    %c0_11 = arith.constant 0 : index
    %c1_12 = arith.constant 1 : index
    %45 = memref.load %arg2[%c0_11, %c1_12] : memref<8x5xf32, #tpu.memory_space<smem>>
    %46 = vector.extract_strided_slice %0 {offsets = [0, 0], sizes = [1, 128], strides = [1, 1]} : vector<8x128xf32> to vector<1x128xf32>
    %47 = vector.broadcast %45 : f32 to vector<1x128xf32>
    %48 = arith.mulf %47, %46 : vector<1x128xf32>
    %c1_13 = arith.constant 1 : index
    %c1_14 = arith.constant 1 : index
    %49 = memref.load %arg2[%c1_13, %c1_14] : memref<8x5xf32, #tpu.memory_space<smem>>
    %50 = vector.extract_strided_slice %0 {offsets = [1, 0], sizes = [1, 128], strides = [1, 1]} : vector<8x128xf32> to vector<1x128xf32>
    %51 = vector.broadcast %49 : f32 to vector<1x128xf32>
    %52 = arith.mulf %51, %50 : vector<1x128xf32>
    %53 = arith.addf %48, %52 : vector<1x128xf32>
    %c2_15 = arith.constant 2 : index
    %c1_16 = arith.constant 1 : index
    %54 = memref.load %arg2[%c2_15, %c1_16] : memref<8x5xf32, #tpu.memory_space<smem>>
    %55 = vector.extract_strided_slice %0 {offsets = [2, 0], sizes = [1, 128], strides = [1, 1]} : vector<8x128xf32> to vector<1x128xf32>
    %56 = vector.broadcast %54 : f32 to vector<1x128xf32>
    %57 = arith.mulf %56, %55 : vector<1x128xf32>
    %58 = arith.addf %53, %57 : vector<1x128xf32>
    %c3_17 = arith.constant 3 : index
    %c1_18 = arith.constant 1 : index
    %59 = memref.load %arg2[%c3_17, %c1_18] : memref<8x5xf32, #tpu.memory_space<smem>>
    %60 = vector.extract_strided_slice %0 {offsets = [3, 0], sizes = [1, 128], strides = [1, 1]} : vector<8x128xf32> to vector<1x128xf32>
    %61 = vector.broadcast %59 : f32 to vector<1x128xf32>
    %62 = arith.mulf %61, %60 : vector<1x128xf32>
    %63 = arith.addf %58, %62 : vector<1x128xf32>
    %c4_19 = arith.constant 4 : index
    %c1_20 = arith.constant 1 : index
    %64 = memref.load %arg2[%c4_19, %c1_20] : memref<8x5xf32, #tpu.memory_space<smem>>
    %65 = vector.extract_strided_slice %0 {offsets = [4, 0], sizes = [1, 128], strides = [1, 1]} : vector<8x128xf32> to vector<1x128xf32>
    %66 = vector.broadcast %64 : f32 to vector<1x128xf32>
    %67 = arith.mulf %66, %65 : vector<1x128xf32>
    %68 = arith.addf %63, %67 : vector<1x128xf32>
    %c5_21 = arith.constant 5 : index
    %c1_22 = arith.constant 1 : index
    %69 = memref.load %arg2[%c5_21, %c1_22] : memref<8x5xf32, #tpu.memory_space<smem>>
    %70 = vector.extract_strided_slice %0 {offsets = [5, 0], sizes = [1, 128], strides = [1, 1]} : vector<8x128xf32> to vector<1x128xf32>
    %71 = vector.broadcast %69 : f32 to vector<1x128xf32>
    %72 = arith.mulf %71, %70 : vector<1x128xf32>
    %73 = arith.addf %68, %72 : vector<1x128xf32>
    %c6_23 = arith.constant 6 : index
    %c1_24 = arith.constant 1 : index
    %74 = memref.load %arg2[%c6_23, %c1_24] : memref<8x5xf32, #tpu.memory_space<smem>>
    %75 = vector.extract_strided_slice %0 {offsets = [6, 0], sizes = [1, 128], strides = [1, 1]} : vector<8x128xf32> to vector<1x128xf32>
    %76 = vector.broadcast %74 : f32 to vector<1x128xf32>
    %77 = arith.mulf %76, %75 : vector<1x128xf32>
    %78 = arith.addf %73, %77 : vector<1x128xf32>
    %c7_25 = arith.constant 7 : index
    %c1_26 = arith.constant 1 : index
    %79 = memref.load %arg2[%c7_25, %c1_26] : memref<8x5xf32, #tpu.memory_space<smem>>
    %80 = vector.extract_strided_slice %0 {offsets = [7, 0], sizes = [1, 128], strides = [1, 1]} : vector<8x128xf32> to vector<1x128xf32>
    %81 = vector.broadcast %79 : f32 to vector<1x128xf32>
    %82 = arith.mulf %81, %80 : vector<1x128xf32>
    %83 = arith.addf %78, %82 : vector<1x128xf32>
    %c1_27 = arith.constant 1 : index
    %84 = memref.load %arg3[%c1_27] : memref<5xf32, #tpu.memory_space<smem>>
    %85 = vector.broadcast %84 : f32 to vector<1x128xf32>
    %86 = arith.addf %83, %85 : vector<1x128xf32>
    %cst_28 = arith.constant 0.000000e+00 : f32
    %87 = vector.broadcast %cst_28 : f32 to vector<1x128xf32>
    %88 = arith.maximumf %86, %87 : vector<1x128xf32>
    %c0_29 = arith.constant 0 : index
    %c2_30 = arith.constant 2 : index
    %89 = memref.load %arg2[%c0_29, %c2_30] : memref<8x5xf32, #tpu.memory_space<smem>>
    %90 = vector.extract_strided_slice %0 {offsets = [0, 0], sizes = [1, 128], strides = [1, 1]} : vector<8x128xf32> to vector<1x128xf32>
    %91 = vector.broadcast %89 : f32 to vector<1x128xf32>
    %92 = arith.mulf %91, %90 : vector<1x128xf32>
    %c1_31 = arith.constant 1 : index
    %c2_32 = arith.constant 2 : index
    %93 = memref.load %arg2[%c1_31, %c2_32] : memref<8x5xf32, #tpu.memory_space<smem>>
    %94 = vector.extract_strided_slice %0 {offsets = [1, 0], sizes = [1, 128], strides = [1, 1]} : vector<8x128xf32> to vector<1x128xf32>
    %95 = vector.broadcast %93 : f32 to vector<1x128xf32>
    %96 = arith.mulf %95, %94 : vector<1x128xf32>
    %97 = arith.addf %92, %96 : vector<1x128xf32>
    %c2_33 = arith.constant 2 : index
    %c2_34 = arith.constant 2 : index
    %98 = memref.load %arg2[%c2_33, %c2_34] : memref<8x5xf32, #tpu.memory_space<smem>>
    %99 = vector.extract_strided_slice %0 {offsets = [2, 0], sizes = [1, 128], strides = [1, 1]} : vector<8x128xf32> to vector<1x128xf32>
    %100 = vector.broadcast %98 : f32 to vector<1x128xf32>
    %101 = arith.mulf %100, %99 : vector<1x128xf32>
    %102 = arith.addf %97, %101 : vector<1x128xf32>
    %c3_35 = arith.constant 3 : index
    %c2_36 = arith.constant 2 : index
    %103 = memref.load %arg2[%c3_35, %c2_36] : memref<8x5xf32, #tpu.memory_space<smem>>
    %104 = vector.extract_strided_slice %0 {offsets = [3, 0], sizes = [1, 128], strides = [1, 1]} : vector<8x128xf32> to vector<1x128xf32>
    %105 = vector.broadcast %103 : f32 to vector<1x128xf32>
    %106 = arith.mulf %105, %104 : vector<1x128xf32>
    %107 = arith.addf %102, %106 : vector<1x128xf32>
    %c4_37 = arith.constant 4 : index
    %c2_38 = arith.constant 2 : index
    %108 = memref.load %arg2[%c4_37, %c2_38] : memref<8x5xf32, #tpu.memory_space<smem>>
    %109 = vector.extract_strided_slice %0 {offsets = [4, 0], sizes = [1, 128], strides = [1, 1]} : vector<8x128xf32> to vector<1x128xf32>
    %110 = vector.broadcast %108 : f32 to vector<1x128xf32>
    %111 = arith.mulf %110, %109 : vector<1x128xf32>
    %112 = arith.addf %107, %111 : vector<1x128xf32>
    %c5_39 = arith.constant 5 : index
    %c2_40 = arith.constant 2 : index
    %113 = memref.load %arg2[%c5_39, %c2_40] : memref<8x5xf32, #tpu.memory_space<smem>>
    %114 = vector.extract_strided_slice %0 {offsets = [5, 0], sizes = [1, 128], strides = [1, 1]} : vector<8x128xf32> to vector<1x128xf32>
    %115 = vector.broadcast %113 : f32 to vector<1x128xf32>
    %116 = arith.mulf %115, %114 : vector<1x128xf32>
    %117 = arith.addf %112, %116 : vector<1x128xf32>
    %c6_41 = arith.constant 6 : index
    %c2_42 = arith.constant 2 : index
    %118 = memref.load %arg2[%c6_41, %c2_42] : memref<8x5xf32, #tpu.memory_space<smem>>
    %119 = vector.extract_strided_slice %0 {offsets = [6, 0], sizes = [1, 128], strides = [1, 1]} : vector<8x128xf32> to vector<1x128xf32>
    %120 = vector.broadcast %118 : f32 to vector<1x128xf32>
    %121 = arith.mulf %120, %119 : vector<1x128xf32>
    %122 = arith.addf %117, %121 : vector<1x128xf32>
    %c7_43 = arith.constant 7 : index
    %c2_44 = arith.constant 2 : index
    %123 = memref.load %arg2[%c7_43, %c2_44] : memref<8x5xf32, #tpu.memory_space<smem>>
    %124 = vector.extract_strided_slice %0 {offsets = [7, 0], sizes = [1, 128], strides = [1, 1]} : vector<8x128xf32> to vector<1x128xf32>
    %125 = vector.broadcast %123 : f32 to vector<1x128xf32>
    %126 = arith.mulf %125, %124 : vector<1x128xf32>
    %127 = arith.addf %122, %126 : vector<1x128xf32>
    %c2_45 = arith.constant 2 : index
    %128 = memref.load %arg3[%c2_45] : memref<5xf32, #tpu.memory_space<smem>>
    %129 = vector.broadcast %128 : f32 to vector<1x128xf32>
    %130 = arith.addf %127, %129 : vector<1x128xf32>
    %cst_46 = arith.constant 0.000000e+00 : f32
    %131 = vector.broadcast %cst_46 : f32 to vector<1x128xf32>
    %132 = arith.maximumf %130, %131 : vector<1x128xf32>
    %c0_47 = arith.constant 0 : index
    %c3_48 = arith.constant 3 : index
    %133 = memref.load %arg2[%c0_47, %c3_48] : memref<8x5xf32, #tpu.memory_space<smem>>
    %134 = vector.extract_strided_slice %0 {offsets = [0, 0], sizes = [1, 128], strides = [1, 1]} : vector<8x128xf32> to vector<1x128xf32>
    %135 = vector.broadcast %133 : f32 to vector<1x128xf32>
    %136 = arith.mulf %135, %134 : vector<1x128xf32>
    %c1_49 = arith.constant 1 : index
    %c3_50 = arith.constant 3 : index
    %137 = memref.load %arg2[%c1_49, %c3_50] : memref<8x5xf32, #tpu.memory_space<smem>>
    %138 = vector.extract_strided_slice %0 {offsets = [1, 0], sizes = [1, 128], strides = [1, 1]} : vector<8x128xf32> to vector<1x128xf32>
    %139 = vector.broadcast %137 : f32 to vector<1x128xf32>
    %140 = arith.mulf %139, %138 : vector<1x128xf32>
    %141 = arith.addf %136, %140 : vector<1x128xf32>
    %c2_51 = arith.constant 2 : index
    %c3_52 = arith.constant 3 : index
    %142 = memref.load %arg2[%c2_51, %c3_52] : memref<8x5xf32, #tpu.memory_space<smem>>
    %143 = vector.extract_strided_slice %0 {offsets = [2, 0], sizes = [1, 128], strides = [1, 1]} : vector<8x128xf32> to vector<1x128xf32>
    %144 = vector.broadcast %142 : f32 to vector<1x128xf32>
    %145 = arith.mulf %144, %143 : vector<1x128xf32>
    %146 = arith.addf %141, %145 : vector<1x128xf32>
    %c3_53 = arith.constant 3 : index
    %c3_54 = arith.constant 3 : index
    %147 = memref.load %arg2[%c3_53, %c3_54] : memref<8x5xf32, #tpu.memory_space<smem>>
    %148 = vector.extract_strided_slice %0 {offsets = [3, 0], sizes = [1, 128], strides = [1, 1]} : vector<8x128xf32> to vector<1x128xf32>
    %149 = vector.broadcast %147 : f32 to vector<1x128xf32>
    %150 = arith.mulf %149, %148 : vector<1x128xf32>
    %151 = arith.addf %146, %150 : vector<1x128xf32>
    %c4_55 = arith.constant 4 : index
    %c3_56 = arith.constant 3 : index
    %152 = memref.load %arg2[%c4_55, %c3_56] : memref<8x5xf32, #tpu.memory_space<smem>>
    %153 = vector.extract_strided_slice %0 {offsets = [4, 0], sizes = [1, 128], strides = [1, 1]} : vector<8x128xf32> to vector<1x128xf32>
    %154 = vector.broadcast %152 : f32 to vector<1x128xf32>
    %155 = arith.mulf %154, %153 : vector<1x128xf32>
    %156 = arith.addf %151, %155 : vector<1x128xf32>
    %c5_57 = arith.constant 5 : index
    %c3_58 = arith.constant 3 : index
    %157 = memref.load %arg2[%c5_57, %c3_58] : memref<8x5xf32, #tpu.memory_space<smem>>
    %158 = vector.extract_strided_slice %0 {offsets = [5, 0], sizes = [1, 128], strides = [1, 1]} : vector<8x128xf32> to vector<1x128xf32>
    %159 = vector.broadcast %157 : f32 to vector<1x128xf32>
    %160 = arith.mulf %159, %158 : vector<1x128xf32>
    %161 = arith.addf %156, %160 : vector<1x128xf32>
    %c6_59 = arith.constant 6 : index
    %c3_60 = arith.constant 3 : index
    %162 = memref.load %arg2[%c6_59, %c3_60] : memref<8x5xf32, #tpu.memory_space<smem>>
    %163 = vector.extract_strided_slice %0 {offsets = [6, 0], sizes = [1, 128], strides = [1, 1]} : vector<8x128xf32> to vector<1x128xf32>
    %164 = vector.broadcast %162 : f32 to vector<1x128xf32>
    %165 = arith.mulf %164, %163 : vector<1x128xf32>
    %166 = arith.addf %161, %165 : vector<1x128xf32>
    %c7_61 = arith.constant 7 : index
    %c3_62 = arith.constant 3 : index
    %167 = memref.load %arg2[%c7_61, %c3_62] : memref<8x5xf32, #tpu.memory_space<smem>>
    %168 = vector.extract_strided_slice %0 {offsets = [7, 0], sizes = [1, 128], strides = [1, 1]} : vector<8x128xf32> to vector<1x128xf32>
    %169 = vector.broadcast %167 : f32 to vector<1x128xf32>
    %170 = arith.mulf %169, %168 : vector<1x128xf32>
    %171 = arith.addf %166, %170 : vector<1x128xf32>
    %c3_63 = arith.constant 3 : index
    %172 = memref.load %arg3[%c3_63] : memref<5xf32, #tpu.memory_space<smem>>
    %173 = vector.broadcast %172 : f32 to vector<1x128xf32>
    %174 = arith.addf %171, %173 : vector<1x128xf32>
    %cst_64 = arith.constant 0.000000e+00 : f32
    %175 = vector.broadcast %cst_64 : f32 to vector<1x128xf32>
    %176 = arith.maximumf %174, %175 : vector<1x128xf32>
    %c0_65 = arith.constant 0 : index
    %c4_66 = arith.constant 4 : index
    %177 = memref.load %arg2[%c0_65, %c4_66] : memref<8x5xf32, #tpu.memory_space<smem>>
    %178 = vector.extract_strided_slice %0 {offsets = [0, 0], sizes = [1, 128], strides = [1, 1]} : vector<8x128xf32> to vector<1x128xf32>
    %179 = vector.broadcast %177 : f32 to vector<1x128xf32>
    %180 = arith.mulf %179, %178 : vector<1x128xf32>
    %c1_67 = arith.constant 1 : index
    %c4_68 = arith.constant 4 : index
    %181 = memref.load %arg2[%c1_67, %c4_68] : memref<8x5xf32, #tpu.memory_space<smem>>
    %182 = vector.extract_strided_slice %0 {offsets = [1, 0], sizes = [1, 128], strides = [1, 1]} : vector<8x128xf32> to vector<1x128xf32>
    %183 = vector.broadcast %181 : f32 to vector<1x128xf32>
    %184 = arith.mulf %183, %182 : vector<1x128xf32>
    %185 = arith.addf %180, %184 : vector<1x128xf32>
    %c2_69 = arith.constant 2 : index
    %c4_70 = arith.constant 4 : index
    %186 = memref.load %arg2[%c2_69, %c4_70] : memref<8x5xf32, #tpu.memory_space<smem>>
    %187 = vector.extract_strided_slice %0 {offsets = [2, 0], sizes = [1, 128], strides = [1, 1]} : vector<8x128xf32> to vector<1x128xf32>
    %188 = vector.broadcast %186 : f32 to vector<1x128xf32>
    %189 = arith.mulf %188, %187 : vector<1x128xf32>
    %190 = arith.addf %185, %189 : vector<1x128xf32>
    %c3_71 = arith.constant 3 : index
    %c4_72 = arith.constant 4 : index
    %191 = memref.load %arg2[%c3_71, %c4_72] : memref<8x5xf32, #tpu.memory_space<smem>>
    %192 = vector.extract_strided_slice %0 {offsets = [3, 0], sizes = [1, 128], strides = [1, 1]} : vector<8x128xf32> to vector<1x128xf32>
    %193 = vector.broadcast %191 : f32 to vector<1x128xf32>
    %194 = arith.mulf %193, %192 : vector<1x128xf32>
    %195 = arith.addf %190, %194 : vector<1x128xf32>
    %c4_73 = arith.constant 4 : index
    %c4_74 = arith.constant 4 : index
    %196 = memref.load %arg2[%c4_73, %c4_74] : memref<8x5xf32, #tpu.memory_space<smem>>
    %197 = vector.extract_strided_slice %0 {offsets = [4, 0], sizes = [1, 128], strides = [1, 1]} : vector<8x128xf32> to vector<1x128xf32>
    %198 = vector.broadcast %196 : f32 to vector<1x128xf32>
    %199 = arith.mulf %198, %197 : vector<1x128xf32>
    %200 = arith.addf %195, %199 : vector<1x128xf32>
    %c5_75 = arith.constant 5 : index
    %c4_76 = arith.constant 4 : index
    %201 = memref.load %arg2[%c5_75, %c4_76] : memref<8x5xf32, #tpu.memory_space<smem>>
    %202 = vector.extract_strided_slice %0 {offsets = [5, 0], sizes = [1, 128], strides = [1, 1]} : vector<8x128xf32> to vector<1x128xf32>
    %203 = vector.broadcast %201 : f32 to vector<1x128xf32>
    %204 = arith.mulf %203, %202 : vector<1x128xf32>
    %205 = arith.addf %200, %204 : vector<1x128xf32>
    %c6_77 = arith.constant 6 : index
    %c4_78 = arith.constant 4 : index
    %206 = memref.load %arg2[%c6_77, %c4_78] : memref<8x5xf32, #tpu.memory_space<smem>>
    %207 = vector.extract_strided_slice %0 {offsets = [6, 0], sizes = [1, 128], strides = [1, 1]} : vector<8x128xf32> to vector<1x128xf32>
    %208 = vector.broadcast %206 : f32 to vector<1x128xf32>
    %209 = arith.mulf %208, %207 : vector<1x128xf32>
    %210 = arith.addf %205, %209 : vector<1x128xf32>
    %c7_79 = arith.constant 7 : index
    %c4_80 = arith.constant 4 : index
    %211 = memref.load %arg2[%c7_79, %c4_80] : memref<8x5xf32, #tpu.memory_space<smem>>
    %212 = vector.extract_strided_slice %0 {offsets = [7, 0], sizes = [1, 128], strides = [1, 1]} : vector<8x128xf32> to vector<1x128xf32>
    %213 = vector.broadcast %211 : f32 to vector<1x128xf32>
    %214 = arith.mulf %213, %212 : vector<1x128xf32>
    %215 = arith.addf %210, %214 : vector<1x128xf32>
    %c4_81 = arith.constant 4 : index
    %216 = memref.load %arg3[%c4_81] : memref<5xf32, #tpu.memory_space<smem>>
    %217 = vector.broadcast %216 : f32 to vector<1x128xf32>
    %218 = arith.addf %215, %217 : vector<1x128xf32>
    %cst_82 = arith.constant 0.000000e+00 : f32
    %219 = vector.broadcast %cst_82 : f32 to vector<1x128xf32>
    %220 = arith.maximumf %218, %219 : vector<1x128xf32>
    %c0_83 = arith.constant 0 : index
    %c0_84 = arith.constant 0 : index
    %221 = memref.load %arg4[%c0_83, %c0_84] : memref<5x3xf32, #tpu.memory_space<smem>>
    %222 = vector.broadcast %221 : f32 to vector<1x128xf32>
    %223 = arith.mulf %222, %44 : vector<1x128xf32>
    %c1_85 = arith.constant 1 : index
    %c0_86 = arith.constant 0 : index
    %224 = memref.load %arg4[%c1_85, %c0_86] : memref<5x3xf32, #tpu.memory_space<smem>>
    %225 = vector.broadcast %224 : f32 to vector<1x128xf32>
    %226 = arith.mulf %225, %88 : vector<1x128xf32>
    %227 = arith.addf %223, %226 : vector<1x128xf32>
    %c2_87 = arith.constant 2 : index
    %c0_88 = arith.constant 0 : index
    %228 = memref.load %arg4[%c2_87, %c0_88] : memref<5x3xf32, #tpu.memory_space<smem>>
    %229 = vector.broadcast %228 : f32 to vector<1x128xf32>
    %230 = arith.mulf %229, %132 : vector<1x128xf32>
    %231 = arith.addf %227, %230 : vector<1x128xf32>
    %c3_89 = arith.constant 3 : index
    %c0_90 = arith.constant 0 : index
    %232 = memref.load %arg4[%c3_89, %c0_90] : memref<5x3xf32, #tpu.memory_space<smem>>
    %233 = vector.broadcast %232 : f32 to vector<1x128xf32>
    %234 = arith.mulf %233, %176 : vector<1x128xf32>
    %235 = arith.addf %231, %234 : vector<1x128xf32>
    %c4_91 = arith.constant 4 : index
    %c0_92 = arith.constant 0 : index
    %236 = memref.load %arg4[%c4_91, %c0_92] : memref<5x3xf32, #tpu.memory_space<smem>>
    %237 = vector.broadcast %236 : f32 to vector<1x128xf32>
    %238 = arith.mulf %237, %220 : vector<1x128xf32>
    %239 = arith.addf %235, %238 : vector<1x128xf32>
    %c0_93 = arith.constant 0 : index
    %240 = memref.load %arg5[%c0_93] : memref<3xf32, #tpu.memory_space<smem>>
    %241 = vector.broadcast %240 : f32 to vector<1x128xf32>
    %242 = arith.addf %239, %241 : vector<1x128xf32>
    %cst_94 = arith.constant 0.000000e+00 : f32
    %243 = vector.broadcast %cst_94 : f32 to vector<1x128xf32>
    %244 = arith.maximumf %242, %243 : vector<1x128xf32>
    %c0_95 = arith.constant 0 : index
    %c1_96 = arith.constant 1 : index
    %245 = memref.load %arg4[%c0_95, %c1_96] : memref<5x3xf32, #tpu.memory_space<smem>>
    %246 = vector.broadcast %245 : f32 to vector<1x128xf32>
    %247 = arith.mulf %246, %44 : vector<1x128xf32>
    %c1_97 = arith.constant 1 : index
    %c1_98 = arith.constant 1 : index
    %248 = memref.load %arg4[%c1_97, %c1_98] : memref<5x3xf32, #tpu.memory_space<smem>>
    %249 = vector.broadcast %248 : f32 to vector<1x128xf32>
    %250 = arith.mulf %249, %88 : vector<1x128xf32>
    %251 = arith.addf %247, %250 : vector<1x128xf32>
    %c2_99 = arith.constant 2 : index
    %c1_100 = arith.constant 1 : index
    %252 = memref.load %arg4[%c2_99, %c1_100] : memref<5x3xf32, #tpu.memory_space<smem>>
    %253 = vector.broadcast %252 : f32 to vector<1x128xf32>
    %254 = arith.mulf %253, %132 : vector<1x128xf32>
    %255 = arith.addf %251, %254 : vector<1x128xf32>
    %c3_101 = arith.constant 3 : index
    %c1_102 = arith.constant 1 : index
    %256 = memref.load %arg4[%c3_101, %c1_102] : memref<5x3xf32, #tpu.memory_space<smem>>
    %257 = vector.broadcast %256 : f32 to vector<1x128xf32>
    %258 = arith.mulf %257, %176 : vector<1x128xf32>
    %259 = arith.addf %255, %258 : vector<1x128xf32>
    %c4_103 = arith.constant 4 : index
    %c1_104 = arith.constant 1 : index
    %260 = memref.load %arg4[%c4_103, %c1_104] : memref<5x3xf32, #tpu.memory_space<smem>>
    %261 = vector.broadcast %260 : f32 to vector<1x128xf32>
    %262 = arith.mulf %261, %220 : vector<1x128xf32>
    %263 = arith.addf %259, %262 : vector<1x128xf32>
    %c1_105 = arith.constant 1 : index
    %264 = memref.load %arg5[%c1_105] : memref<3xf32, #tpu.memory_space<smem>>
    %265 = vector.broadcast %264 : f32 to vector<1x128xf32>
    %266 = arith.addf %263, %265 : vector<1x128xf32>
    %cst_106 = arith.constant 0.000000e+00 : f32
    %267 = vector.broadcast %cst_106 : f32 to vector<1x128xf32>
    %268 = arith.maximumf %266, %267 : vector<1x128xf32>
    %c0_107 = arith.constant 0 : index
    %c2_108 = arith.constant 2 : index
    %269 = memref.load %arg4[%c0_107, %c2_108] : memref<5x3xf32, #tpu.memory_space<smem>>
    %270 = vector.broadcast %269 : f32 to vector<1x128xf32>
    %271 = arith.mulf %270, %44 : vector<1x128xf32>
    %c1_109 = arith.constant 1 : index
    %c2_110 = arith.constant 2 : index
    %272 = memref.load %arg4[%c1_109, %c2_110] : memref<5x3xf32, #tpu.memory_space<smem>>
    %273 = vector.broadcast %272 : f32 to vector<1x128xf32>
    %274 = arith.mulf %273, %88 : vector<1x128xf32>
    %275 = arith.addf %271, %274 : vector<1x128xf32>
    %c2_111 = arith.constant 2 : index
    %c2_112 = arith.constant 2 : index
    %276 = memref.load %arg4[%c2_111, %c2_112] : memref<5x3xf32, #tpu.memory_space<smem>>
    %277 = vector.broadcast %276 : f32 to vector<1x128xf32>
    %278 = arith.mulf %277, %132 : vector<1x128xf32>
    %279 = arith.addf %275, %278 : vector<1x128xf32>
    %c3_113 = arith.constant 3 : index
    %c2_114 = arith.constant 2 : index
    %280 = memref.load %arg4[%c3_113, %c2_114] : memref<5x3xf32, #tpu.memory_space<smem>>
    %281 = vector.broadcast %280 : f32 to vector<1x128xf32>
    %282 = arith.mulf %281, %176 : vector<1x128xf32>
    %283 = arith.addf %279, %282 : vector<1x128xf32>
    %c4_115 = arith.constant 4 : index
    %c2_116 = arith.constant 2 : index
    %284 = memref.load %arg4[%c4_115, %c2_116] : memref<5x3xf32, #tpu.memory_space<smem>>
    %285 = vector.broadcast %284 : f32 to vector<1x128xf32>
    %286 = arith.mulf %285, %220 : vector<1x128xf32>
    %287 = arith.addf %283, %286 : vector<1x128xf32>
    %c2_117 = arith.constant 2 : index
    %288 = memref.load %arg5[%c2_117] : memref<3xf32, #tpu.memory_space<smem>>
    %289 = vector.broadcast %288 : f32 to vector<1x128xf32>
    %290 = arith.addf %287, %289 : vector<1x128xf32>
    %cst_118 = arith.constant 0.000000e+00 : f32
    %291 = vector.broadcast %cst_118 : f32 to vector<1x128xf32>
    %292 = arith.maximumf %290, %291 : vector<1x128xf32>
    %c0_119 = arith.constant 0 : index
    %c0_120 = arith.constant 0 : index
    %293 = memref.load %arg6[%c0_119, %c0_120] : memref<3x1xf32, #tpu.memory_space<smem>>
    %294 = vector.broadcast %293 : f32 to vector<1x128xf32>
    %295 = arith.mulf %294, %244 : vector<1x128xf32>
    %c1_121 = arith.constant 1 : index
    %c0_122 = arith.constant 0 : index
    %296 = memref.load %arg6[%c1_121, %c0_122] : memref<3x1xf32, #tpu.memory_space<smem>>
    %297 = vector.broadcast %296 : f32 to vector<1x128xf32>
    %298 = arith.mulf %297, %268 : vector<1x128xf32>
    %299 = arith.addf %295, %298 : vector<1x128xf32>
    %c2_123 = arith.constant 2 : index
    %c0_124 = arith.constant 0 : index
    %300 = memref.load %arg6[%c2_123, %c0_124] : memref<3x1xf32, #tpu.memory_space<smem>>
    %301 = vector.broadcast %300 : f32 to vector<1x128xf32>
    %302 = arith.mulf %301, %292 : vector<1x128xf32>
    %303 = arith.addf %299, %302 : vector<1x128xf32>
    %c0_125 = arith.constant 0 : index
    %304 = memref.load %arg7[%c0_125] : memref<1xf32, #tpu.memory_space<smem>>
    %305 = vector.broadcast %304 : f32 to vector<1x128xf32>
    %306 = arith.addf %303, %305 : vector<1x128xf32>
    %cst_126 = arith.constant 0.000000e+00 : f32
    %307 = vector.broadcast %cst_126 : f32 to vector<1x128xf32>
    %308 = arith.subf %307, %306 : vector<1x128xf32>
    %309 = math.exp %308 : vector<1x128xf32>
    %cst_127 = arith.constant 1.000000e+00 : f32
    %310 = vector.broadcast %cst_127 : f32 to vector<1x128xf32>
    %311 = arith.addf %310, %309 : vector<1x128xf32>
    %312 = tpu.reciprocal %311 {approx = true} : vector<1x128xf32> -> vector<1x128xf32>
    %c0_128 = arith.constant 0 : index
    %c0_129 = arith.constant 0 : index
    %313 = vector.load %arg8[%c0_128, %c0_129] : memref<1x128xf32, #tpu.memory_space<vmem>>, vector<1x128xf32>
    tpu.vector_store %arg8[%c0_128, %c0_129], %312 {strides = array<i32>} : memref<1x128xf32, #tpu.memory_space<vmem>>, vector<1x128xf32>,
    return
  }
  func.func @transform_0(%arg0: i32) -> (i32, i32) {
    %c0_i32 = arith.constant 0 : i32
    %c0_i32_0 = arith.constant 0 : i32
    return %c0_i32, %arg0 : i32, i32
  }
  func.func @transform_1(%arg0: i32) -> (i32, i32) {
    %c0_i32 = arith.constant 0 : i32
    %c0_i32_0 = arith.constant 0 : i32
    %c0_i32_1 = arith.constant 0 : i32
    return %c0_i32, %c0_i32_0 : i32, i32
  }
  func.func @transform_2(%arg0: i32) -> i32 {
    %c0_i32 = arith.constant 0 : i32
    %c0_i32_0 = arith.constant 0 : i32
    return %c0_i32 : i32
  }
  func.func @transform_3(%arg0: i32) -> (i32, i32) {
    %c0_i32 = arith.constant 0 : i32
    %c0_i32_0 = arith.constant 0 : i32
    %c0_i32_1 = arith.constant 0 : i32
    return %c0_i32, %c0_i32_0 : i32, i32
  }
  func.func @transform_4(%arg0: i32) -> i32 {
    %c0_i32 = arith.constant 0 : i32
    %c0_i32_0 = arith.constant 0 : i32
    return %c0_i32 : i32
  }
  func.func @transform_5(%arg0: i32) -> (i32, i32) {
    %c0_i32 = arith.constant 0 : i32
    %c0_i32_0 = arith.constant 0 : i32
    %c0_i32_1 = arith.constant 0 : i32
    return %c0_i32, %c0_i32_0 : i32, i32
  }
  func.func @transform_6(%arg0: i32) -> i32 {
    %c0_i32 = arith.constant 0 : i32
    %c0_i32_0 = arith.constant 0 : i32
    return %c0_i32 : i32
  }
  func.func @transform_7(%arg0: i32) -> (i32, i32) {
    %c0_i32 = arith.constant 0 : i32
    %c0_i32_0 = arith.constant 0 : i32
    return %c0_i32, %arg0 : i32, i32
  }
}

</mosaic_0001>

<llo_original>
// kernel: tpu_custom_call.1
$region0: #{tpu_custom_call.1}
  #allocation0 [shape = 'u32[]', space=smem, size = 0x4, offset = 0x4, fixed_abs, tag = 'smem constant byte address 0x4 - core index']
  #allocation1 [shape = 'u32[72,128]{1,0:T(1,128)}', space=vmem, size = 0x9000, scoped, tag = 'internal scratch']
  #allocation2 [shape = 'f32[1]{0:T(128)S(6)}', space=smem, size = 0x200, scoped, tag = 'scoped memory for tpu_custom_call.1']
  %s0 = inlined_call_operand.hbm [shape: f32[8,256], index: 0, kind: input, shape index: {}]
  %s1 = inlined_call_operand.vmem [shape: f32[8,5], index: 1, kind: input, shape index: {}]
  %s2 = inlined_call_operand.vmem [shape: f32[5], index: 2, kind: input, shape index: {}]
  %s3 = inlined_call_operand.vmem [shape: f32[5,3], index: 3, kind: input, shape index: {}]
  %s4 = inlined_call_operand.vmem [shape: f32[3], index: 4, kind: input, shape index: {}]
  %s5 = inlined_call_operand.vmem [shape: f32[3,1], index: 5, kind: input, shape index: {}]
  %s6 = inlined_call_operand.<no memory space> [shape: f32[1], index: 6, kind: input, shape index: {}]
  %s7 = inlined_call_operand.hbm [shape: f32[1,256], index: 7, kind: output, shape index: {}]
  %s8 = sld [smem:[#allocation0]]
  $region85: #{tpu_custom_call.1} parent=0
    _
  %s10 = ssub.s32 1, %s8
  %s11 = scalar_select 0, %s10, %s8
  %12 = sst [smem:[#allocation2]] %s6
  $region1: #{tpu_custom_call.1} parent=0
    #allocation3 [shape = 'u8[8192]{0}', space=vmem, size = 0x2000, scoped, tag = 'input window, operand 0']
    #allocation4 [shape = 's32[2]{0}', space=sflag, size = 0x8, scoped, tag = 'scoped memory for tpu_custom_call.1']
    #allocation5 [shape = 's32[2]{0}', space=sflag, size = 0x8, scoped, tag = 'scoped memory for tpu_custom_call.1']
    #allocation6 [shape = 's32[2]{0}', space=sflag, size = 0x8, scoped, tag = 'scoped memory for tpu_custom_call.1']
    #allocation7 [shape = 'u8[4096]{0}', space=smem, size = 0x1000, scoped, tag = 'input window, operand 1, single buffered']
    #allocation8 [shape = 'u8[512]{0}', space=smem, size = 0x200, scoped, tag = 'input window, operand 2, single buffered']
    #allocation9 [shape = 's32[1]{0}', space=sflag, size = 0x4, scoped, tag = 'scoped memory for tpu_custom_call.1']
    #allocation10 [shape = 'u8[4096]{0}', space=smem, size = 0x1000, scoped, tag = 'input window, operand 3, single buffered']
    #allocation11 [shape = 'u8[512]{0}', space=smem, size = 0x200, scoped, tag = 'input window, operand 4, single buffered']
    #allocation12 [shape = 's32[1]{0}', space=sflag, size = 0x4, scoped, tag = 'scoped memory for tpu_custom_call.1']
    #allocation13 [shape = 'u8[2048]{0}', space=smem, size = 0x800, scoped, tag = 'input window, operand 5, single buffered']
    #allocation14 [shape = 'u8[1024]{0}', space=vmem, size = 0x400, scoped, tag = 'output window, operand 0']
    %13 = vsyncpa [#allocation4], 0
    %s14 = scalar_lea.sflag [#allocation4], 1
    %15 = vsyncpa %s14, 0
    %16 = vsyncpa [#allocation6], 0
    %17 = vsyncpa [#allocation9], 0
    %18 = vsyncpa [#allocation12], 0
    %19 = vsyncpa [#allocation5], 0
    %s20 = scalar_lea.sflag [#allocation5], 1
    %21 = vsyncpa %s20, 0
    loop: start=0, step=1, limit=4
    $region2: #{tpu_custom_call.1} parent=1 // loop_pre_header
      _
    $region3: #{tpu_custom_call.1} parent=1 // loop_header
      %s23 = sphi 0, %s27
      %p24 = scmp.ge.s32.totalorder %s23, 4
      %s33 = sphi 0, %s35
      %s36 = sphi 0, %s33
      %s37 = sphi 0, %s36
      %s53 = sphi 0, %s37
      %s57 = sphi 0, %s57
      %s59 = sphi 0, %s57
      %s60 = sphi 0, %s59
      %s74 = sphi 0, %s60
      %s78 = sphi 0, %s78
      %s80 = sphi 0, %s78
      %s81 = sphi 0, %s80
      %s95 = sphi 0, %s81
      %s99 = sphi 0, %s99
      %s101 = sphi 0, %s99
      %s102 = sphi 0, %s101
      %s116 = sphi 0, %s102
      %s120 = sphi 0, %s120
      %s122 = sphi 0, %s120
      %s123 = sphi 0, %s122
      %s137 = sphi 0, %s123
      %s141 = sphi 0, %s141
      %s143 = sphi 0, %s141
      %s144 = sphi 0, %s143
      %s158 = sphi 0, %s144
      %s162 = sphi 0, %s162
      %s164 = sphi 0, %s162
      %s165 = sphi 0, %s164
      %s179 = sphi 0, %s165
      %s185 = sphi 0, %s187
      %s188 = sphi 0, %s185
      %s189 = sphi 0, %s188
      %s205 = sphi 0, %s189
    $region4: #{tpu_custom_call.1} parent=1 // loop_header_branch
      %26 = sbr.rel (%p24) target = $region8
    $region5: #{tpu_custom_call.1} parent=1 // loop_body
      %s28 = ssub.s32 %s23, 1
      %s29 = ssub.s32 %s23, 2
      %s30 = sadd.s32 %s23, 1
      %s31 = ssub.s32 %s23, %s30
      %p32 = scmp.eq.s32.totalorder %s31, 0
      %s34 = sadd.s32 %s33, 1
      %s35 = scalar_select %p32, %s33, %s34
      %p38 = pneg %p32
      %p39 = scmp.eq.s32.totalorder %s23, 1
      %p40 = por %p38, %p39
      %p41 = scmp.ne.s32.totalorder %s33, %s36
      %p42 = scmp.eq.s32.totalorder %s23, 0
      %p43 = por %p41, %p42
      %p44 = scmp.ne.s32.totalorder %s33, %s36
      %p45 = scmp.eq.s32.totalorder %s28, 1
      %p46 = por %p44, %p45
      %p47 = scmp.ne.s32.totalorder %s36, %s37
      %p48 = scmp.eq.s32.totalorder %s28, 0
      %p49 = por %p47, %p48
      %p50 = scmp.ne.s32.totalorder %s36, %s37
      %p51 = scmp.eq.s32.totalorder %s29, 1
      %p52 = por %p50, %p51
      %p54 = scmp.ne.s32.totalorder %s37, %s53
      %p55 = scmp.eq.s32.totalorder %s29, 0
      %p56 = por %p54, %p55
      %s58 = sadd.s32 %s57, 1
      %p61 = scmp.eq.s32.totalorder %s23, 1
      %p62 = scmp.ne.s32.totalorder %s57, %s59
      %p63 = scmp.eq.s32.totalorder %s23, 0
      %p64 = por %p62, %p63
      %p65 = scmp.ne.s32.totalorder %s57, %s59
      %p66 = scmp.eq.s32.totalorder %s28, 1
      %p67 = por %p65, %p66
      %p68 = scmp.ne.s32.totalorder %s59, %s60
      %p69 = scmp.eq.s32.totalorder %s28, 0
      %p70 = por %p68, %p69
      %p71 = scmp.ne.s32.totalorder %s59, %s60
      %p72 = scmp.eq.s32.totalorder %s29, 1
      %p73 = por %p71, %p72
      %p75 = scmp.ne.s32.totalorder %s60, %s74
      %p76 = scmp.eq.s32.totalorder %s29, 0
      %p77 = por %p75, %p76
      %s79 = sadd.s32 %s78, 1
      %p82 = scmp.eq.s32.totalorder %s23, 1
      %p83 = scmp.ne.s32.totalorder %s78, %s80
      %p84 = scmp.eq.s32.totalorder %s23, 0
      %p85 = por %p83, %p84
      %p86 = scmp.ne.s32.totalorder %s78, %s80
      %p87 = scmp.eq.s32.totalorder %s28, 1
      %p88 = por %p86, %p87
      %p89 = scmp.ne.s32.totalorder %s80, %s81
      %p90 = scmp.eq.s32.totalorder %s28, 0
      %p91 = por %p89, %p90
      %p92 = scmp.ne.s32.totalorder %s80, %s81
      %p93 = scmp.eq.s32.totalorder %s29, 1
      %p94 = por %p92, %p93
      %p96 = scmp.ne.s32.totalorder %s81, %s95
      %p97 = scmp.eq.s32.totalorder %s29, 0
      %p98 = por %p96, %p97
      %s100 = sadd.s32 %s99, 1
      %p103 = scmp.eq.s32.totalorder %s23, 1
      %p104 = scmp.ne.s32.totalorder %s99, %s101
      %p105 = scmp.eq.s32.totalorder %s23, 0
      %p106 = por %p104, %p105
      %p107 = scmp.ne.s32.totalorder %s99, %s101
      %p108 = scmp.eq.s32.totalorder %s28, 1
      %p109 = por %p107, %p108
      %p110 = scmp.ne.s32.totalorder %s101, %s102
      %p111 = scmp.eq.s32.totalorder %s28, 0
      %p112 = por %p110, %p111
      %p113 = scmp.ne.s32.totalorder %s101, %s102
      %p114 = scmp.eq.s32.totalorder %s29, 1
      %p115 = por %p113, %p114
      %p117 = scmp.ne.s32.totalorder %s102, %s116
      %p118 = scmp.eq.s32.totalorder %s29, 0
      %p119 = por %p117, %p118
      %s121 = sadd.s32 %s120, 1
      %p124 = scmp.eq.s32.totalorder %s23, 1
      %p125 = scmp.ne.s32.totalorder %s120, %s122
      %p126 = scmp.eq.s32.totalorder %s23, 0
      %p127 = por %p125, %p126
      %p128 = scmp.ne.s32.totalorder %s120, %s122
      %p129 = scmp.eq.s32.totalorder %s28, 1
      %p130 = por %p128, %p129
      %p131 = scmp.ne.s32.totalorder %s122, %s123
      %p132 = scmp.eq.s32.totalorder %s28, 0
      %p133 = por %p131, %p132
      %p134 = scmp.ne.s32.totalorder %s122, %s123
      %p135 = scmp.eq.s32.totalorder %s29, 1
      %p136 = por %p134, %p135
      %p138 = scmp.ne.s32.totalorder %s123, %s137
      %p139 = scmp.eq.s32.totalorder %s29, 0
      %p140 = por %p138, %p139
      %s142 = sadd.s32 %s141, 1
      %p145 = scmp.eq.s32.totalorder %s23, 1
      %p146 = scmp.ne.s32.totalorder %s141, %s143
      %p147 = scmp.eq.s32.totalorder %s23, 0
      %p148 = por %p146, %p147
      %p149 = scmp.ne.s32.totalorder %s141, %s143
      %p150 = scmp.eq.s32.totalorder %s28, 1
      %p151 = por %p149, %p150
      %p152 = scmp.ne.s32.totalorder %s143, %s144
      %p153 = scmp.eq.s32.totalorder %s28, 0
      %p154 = por %p152, %p153
      %p155 = scmp.ne.s32.totalorder %s143, %s144
      %p156 = scmp.eq.s32.totalorder %s29, 1
      %p157 = por %p155, %p156
      %p159 = scmp.ne.s32.totalorder %s144, %s158
      %p160 = scmp.eq.s32.totalorder %s29, 0
      %p161 = por %p159, %p160
      %s163 = sadd.s32 %s162, 1
      %p166 = scmp.eq.s32.totalorder %s23, 1
      %p167 = scmp.ne.s32.totalorder %s162, %s164
      %p168 = scmp.eq.s32.totalorder %s23, 0
      %p169 = por %p167, %p168
      %p170 = scmp.ne.s32.totalorder %s162, %s164
      %p171 = scmp.eq.s32.totalorder %s28, 1
      %p172 = por %p170, %p171
      %p173 = scmp.ne.s32.totalorder %s164, %s165
      %p174 = scmp.eq.s32.totalorder %s28, 0
      %p175 = por %p173, %p174
      %p176 = scmp.ne.s32.totalorder %s164, %s165
      %p177 = scmp.eq.s32.totalorder %s29, 1
      %p178 = por %p176, %p177
      %p180 = scmp.ne.s32.totalorder %s165, %s179
      %p181 = scmp.eq.s32.totalorder %s29, 0
      %p182 = por %p180, %p181
      %s183 = ssub.s32 %s23, %s30
      %p184 = scmp.eq.s32.totalorder %s183, 0
      %s186 = sadd.s32 %s185, 1
      %s187 = scalar_select %p184, %s185, %s186
      %p190 = pneg %p184
      %p191 = scmp.eq.s32.totalorder %s23, 1
      %p192 = por %p190, %p191
      %p193 = scmp.ne.s32.totalorder %s185, %s188
      %p194 = scmp.eq.s32.totalorder %s23, 0
      %p195 = por %p193, %p194
      %p196 = scmp.ne.s32.totalorder %s185, %s188
      %p197 = scmp.eq.s32.totalorder %s28, 1
      %p198 = por %p196, %p197
      %p199 = scmp.ne.s32.totalorder %s188, %s189
      %p200 = scmp.eq.s32.totalorder %s28, 0
      %p201 = por %p199, %p200
      %p202 = scmp.ne.s32.totalorder %s188, %s189
      %p203 = scmp.eq.s32.totalorder %s29, 1
      %p204 = por %p202, %p203
      %p206 = scmp.ne.s32.totalorder %s189, %s205
      %p207 = scmp.eq.s32.totalorder %s29, 0
      %p208 = por %p206, %p207
      %p209 = scmp.le.s32.totalorder 1, %s23
      %p210 = scmp.lt.s32.totalorder %s23, 3
      %p211 = pnand %p209, %p210
      %p212 = pneg %p211
      // Predicated region
      $region9: #{tpu_custom_call.1} parent=5 // pred_check
        _
      $region10: #{tpu_custom_call.1} parent=5 // pred_check_branch
        %214 = sbr.rel (%p211) target = $region12
      $region11: #{tpu_custom_call.1} parent=5 // pred_region
        %s215 = ssub.s32 %s23, 1
        // Predicated region
        $region13: #{tpu_custom_call.1} parent=11 // pred_check
          %p216 = pneg %p70
        $region14: #{tpu_custom_call.1} parent=11 // pred_check_branch
          %218 = sbr.rel (%p216) target = $region16
        $region15: #{tpu_custom_call.1} parent=11 // pred_region
          %220 = vsyncadd [#allocation6], 0
          %s222 = sshll.u32 %s1, 4
          %s223 = int_to_ptr.vmem [resolvable:$true] %s222
          %225 = dma.vmem_to_smem %s223, 128, [#allocation7], [#allocation6]
        $region16: #{tpu_custom_call.1} parent=11 // pred_fallthru
          _
        // Predicated region
        $region17: #{tpu_custom_call.1} parent=11 // pred_check
          %p226 = pneg %p91
        $region18: #{tpu_custom_call.1} parent=11 // pred_check_branch
          %228 = sbr.rel (%p226) target = $region20
        $region19: #{tpu_custom_call.1} parent=11 // pred_region
          %230 = vsyncadd [#allocation9], 0
          %s232 = sshll.u32 %s2, 4
          %s233 = int_to_ptr.vmem [resolvable:$true] %s232
          %235 = dma.vmem_to_smem %s233, 16, [#allocation8], [#allocation9]
        $region20: #{tpu_custom_call.1} parent=11 // pred_fallthru
          _
        // Predicated region
        $region21: #{tpu_custom_call.1} parent=11 // pred_check
          %p236 = pneg %p112
        $region22: #{tpu_custom_call.1} parent=11 // pred_check_branch
          %238 = sbr.rel (%p236) target = $region24
        $region23: #{tpu_custom_call.1} parent=11 // pred_region
          %240 = vsyncadd [#allocation9], 0
          %s242 = sshll.u32 %s3, 4
          %s243 = int_to_ptr.vmem [resolvable:$true] %s242
          %245 = dma.vmem_to_smem %s243, 128, [#allocation10], [#allocation9]
        $region24: #{tpu_custom_call.1} parent=11 // pred_fallthru
          _
        // Predicated region
        $region25: #{tpu_custom_call.1} parent=11 // pred_check
          %p246 = pneg %p133
        $region26: #{tpu_custom_call.1} parent=11 // pred_check_branch
          %248 = sbr.rel (%p246) target = $region28
        $region27: #{tpu_custom_call.1} parent=11 // pred_region
          %250 = vsyncadd [#allocation12], 0
          %s252 = sshll.u32 %s4, 4
          %s253 = int_to_ptr.vmem [resolvable:$true] %s252
          %255 = dma.vmem_to_smem %s253, 16, [#allocation11], [#allocation12]
        $region28: #{tpu_custom_call.1} parent=11 // pred_fallthru
          _
        // Predicated region
        $region29: #{tpu_custom_call.1} parent=11 // pred_check
          %p256 = pneg %p154
        $region30: #{tpu_custom_call.1} parent=11 // pred_check_branch
          %258 = sbr.rel (%p256) target = $region32
        $region31: #{tpu_custom_call.1} parent=11 // pred_region
          %260 = vsyncadd [#allocation12], 0
          %s262 = sshll.u32 %s5, 4
          %s263 = int_to_ptr.vmem [resolvable:$true] %s262
          %265 = dma.vmem_to_smem %s263, 64, [#allocation13], [#allocation12]
        $region32: #{tpu_custom_call.1} parent=11 // pred_fallthru
          _
        // Predicated region
        $region33: #{tpu_custom_call.1} parent=11 // pred_check
          %p266 = pneg %p175
        $region34: #{tpu_custom_call.1} parent=11 // pred_check_branch
          %268 = sbr.rel (%p266) target = $region36
        $region35: #{tpu_custom_call.1} parent=11 // pred_region
          _
        $region36: #{tpu_custom_call.1} parent=11 // pred_fallthru
          _
      $region12: #{tpu_custom_call.1} parent=5 // pred_fallthru
        _
      %p269 = scmp.lt.s32.totalorder %s23, 2
      // Predicated region
      $region37: #{tpu_custom_call.1} parent=5 // pred_check
        %p270 = pneg %p269
      $region38: #{tpu_custom_call.1} parent=5 // pred_check_branch
        %272 = sbr.rel (%p270) target = $region40
      $region39: #{tpu_custom_call.1} parent=5 // pred_region
        // Predicated region
        $region41: #{tpu_custom_call.1} parent=39 // pred_check
          %p273 = pneg %p43
        $region42: #{tpu_custom_call.1} parent=39 // pred_check_branch
          %275 = sbr.rel (%p273) target = $region44
        $region43: #{tpu_custom_call.1} parent=39 // pred_region
          %s276 = sand.u32 %s33, 1
          %s277 = scalar_lea.sflag [#allocation4], %s276
          %s278 = sand.u32 %s33, 1
          %s279 = smul.addr %s278, 8
          %s280 = scalar_lea.vmem [#allocation3], %s279
          %282 = vsyncadd %s277, 0
          %s283 = smul.addr %s23, 8
          %s284 = scalar_lea.hbm %s0, %s283
          %s286 = sshll.u32 %s284, 4
          %s287 = int_to_ptr.hbm [resolvable:$true] %s286
          %s288 = sshll.u32 %s280, 4
          %s289 = int_to_ptr.vmem [resolvable:$true] %s288
          %291 = dma.hbm_to_vmem [thread:$0]  %s287, 128, %s289, %s277
        $region44: #{tpu_custom_call.1} parent=39 // pred_fallthru
          _
      $region40: #{tpu_custom_call.1} parent=5 // pred_fallthru
        _
      %p292 = scmp.le.s32.totalorder 1, %s23
      %p293 = scmp.lt.s32.totalorder %s23, 3
      %p294 = pnand %p292, %p293
      %p295 = pneg %p294
      // Predicated region
      $region45: #{tpu_custom_call.1} parent=5 // pred_check
        _
      $region46: #{tpu_custom_call.1} parent=5 // pred_check_branch
        %297 = sbr.rel (%p294) target = $region48
      $region47: #{tpu_custom_call.1} parent=5 // pred_region
        %s298 = ssub.s32 %s23, 1
        %s299 = sand.u32 %s36, 1
        %s300 = scalar_lea.sflag [#allocation4], %s299
        %s301 = sand.u32 %s36, 1
        %s302 = smul.addr %s301, 8
        %s303 = scalar_lea.vmem [#allocation3], %s302
        // Predicated region
        $region49: #{tpu_custom_call.1} parent=47 // pred_check
          %p304 = pneg %p49
        $region50: #{tpu_custom_call.1} parent=47 // pred_check_branch
          %306 = sbr.rel (%p304) target = $region52
        $region51: #{tpu_custom_call.1} parent=47 // pred_region
          %308 = dma.done %s300, 128
        $region52: #{tpu_custom_call.1} parent=47 // pred_fallthru
          _
        // Predicated region
        $region53: #{tpu_custom_call.1} parent=47 // pred_check
          %p309 = pneg %p70
        $region54: #{tpu_custom_call.1} parent=47 // pred_check_branch
          %311 = sbr.rel (%p309) target = $region56
        $region55: #{tpu_custom_call.1} parent=47 // pred_region
          %313 = dma.done [#allocation6], 128
        $region56: #{tpu_custom_call.1} parent=47 // pred_fallthru
          _
        // Predicated region
        $region57: #{tpu_custom_call.1} parent=47 // pred_check
          %p314 = pneg %p91
        $region58: #{tpu_custom_call.1} parent=47 // pred_check_branch
          %316 = sbr.rel (%p314) target = $region60
        $region59: #{tpu_custom_call.1} parent=47 // pred_region
          %318 = dma.done [#allocation9], 16
        $region60: #{tpu_custom_call.1} parent=47 // pred_fallthru
          _
        // Predicated region
        $region61: #{tpu_custom_call.1} parent=47 // pred_check
          %p319 = pneg %p112
        $region62: #{tpu_custom_call.1} parent=47 // pred_check_branch
          %321 = sbr.rel (%p319) target = $region64
        $region63: #{tpu_custom_call.1} parent=47 // pred_region
          %323 = dma.done [#allocation9], 128
        $region64: #{tpu_custom_call.1} parent=47 // pred_fallthru
          _
        // Predicated region
        $region65: #{tpu_custom_call.1} parent=47 // pred_check
          %p324 = pneg %p133
        $region66: #{tpu_custom_call.1} parent=47 // pred_check_branch
          %326 = sbr.rel (%p324) target = $region68
        $region67: #{tpu_custom_call.1} parent=47 // pred_region
          %328 = dma.done [#allocation12], 16
        $region68: #{tpu_custom_call.1} parent=47 // pred_fallthru
          _
        // Predicated region
        $region69: #{tpu_custom_call.1} parent=47 // pred_check
          %p329 = pneg %p154
        $region70: #{tpu_custom_call.1} parent=47 // pred_check_branch
          %331 = sbr.rel (%p329) target = $region72
        $region71: #{tpu_custom_call.1} parent=47 // pred_region
          %333 = dma.done [#allocation12], 64
        $region72: #{tpu_custom_call.1} parent=47 // pred_fallthru
          _
        %334 = sfence
        %s335 = sand.u32 %s36, 1
        %s336 = scalar_lea.sflag [#allocation4], %s335
        %s337 = sand.u32 %s36, 1
        %s338 = smul.addr %s337, 8
        %s339 = scalar_lea.vmem [#allocation3], %s338
        %p340 = pneg %p49
        %p341 = pneg %p46
        %p342 = pneg %p70
        %p343 = pneg %p67
        %p344 = pneg %p91
        %p345 = pneg %p88
        %p346 = pneg %p112
        %p347 = pneg %p109
        %p348 = pneg %p133
        %p349 = pneg %p130
        %p350 = pneg %p154
        %p351 = pneg %p151
        %p352 = pneg %p175
        %p353 = pneg %p172
        %p354 = pneg %p201
        %p355 = pneg %p198
        %s356 = sand.u32 %s188, 1
        %s357 = scalar_lea.sflag [#allocation5], %s356
        %s358 = sand.u32 %s188, 1
        %s359 = scalar_lea.vmem [#allocation14], %s358
        %v360 = vld [vmem:[%s303] sm:$0xff]
        %s361 = sld [smem:[#allocation7]]
        %v362 = vstv %s361
        %v363 = vmul.f32 %v362, %v360
        %s364 = sld [smem:[#allocation7 + $0x80]]
        %v365 = vstv %s364
        %v366 = vmul.f32 %v365, %v360
        %v368 = vrot.slane %v366, 1
        %v370 = vadd.f32 %v363, %v368
        %s371 = sld [smem:[#allocation7 + $0x100]]
        %v372 = vstv %s371
        %v373 = vmul.f32 %v372, %v360
        %v375 = vrot.slane %v373, 2
        %v377 = vadd.f32 %v370, %v375
        %s378 = sld [smem:[#allocation7 + $0x180]]
        %v379 = vstv %s378
        %v380 = vmul.f32 %v379, %v360
        %v382 = vrot.slane %v380, 3
        %v384 = vadd.f32 %v377, %v382
        %s385 = sld [smem:[#allocation7 + $0x200]]
        %v386 = vstv %s385
        %v387 = vmul.f32 %v386, %v360
        %v389 = vrot.slane %v387, 4
        %v391 = vadd.f32 %v384, %v389
        %s392 = sld [smem:[#allocation7 + $0x280]]
        %v393 = vstv %s392
        %v394 = vmul.f32 %v393, %v360
        %v396 = vrot.slane %v394, 5
        %v398 = vadd.f32 %v391, %v396
        %s399 = sld [smem:[#allocation7 + $0x300]]
        %v400 = vstv %s399
        %v401 = vmul.f32 %v400, %v360
        %v403 = vrot.slane %v401, 6
        %v405 = vadd.f32 %v398, %v403
        %s406 = sld [smem:[#allocation7 + $0x380]]
        %v407 = vstv %s406
        %v408 = vmul.f32 %v407, %v360
        %v410 = vrot.slane %v408, 7
        %v412 = vadd.f32 %v405, %v410
        %s413 = sld [smem:[#allocation8]]
        %v414 = vstv %s413
        %v415 = vadd.f32 %v412, %v414
        %v416 = vmax.f32 %v415, 0.0
        %s417 = sld [smem:[#allocation7 + $0x1]]
        %v418 = vstv %s417
        %v419 = vmul.f32 %v418, %v360
        %s420 = sld [smem:[#allocation7 + $0x81]]
        %v421 = vstv %s420
        %v422 = vmul.f32 %v421, %v360
        %v424 = vrot.slane %v422, 1
        %v426 = vadd.f32 %v419, %v424
        %s427 = sld [smem:[#allocation7 + $0x101]]
        %v428 = vstv %s427
        %v429 = vmul.f32 %v428, %v360
        %v431 = vrot.slane %v429, 2
        %v433 = vadd.f32 %v426, %v431
        %s434 = sld [smem:[#allocation7 + $0x181]]
        %v435 = vstv %s434
        %v436 = vmul.f32 %v435, %v360
        %v438 = vrot.slane %v436, 3
        %v440 = vadd.f32 %v433, %v438
        %s441 = sld [smem:[#allocation7 + $0x201]]
        %v442 = vstv %s441
        %v443 = vmul.f32 %v442, %v360
        %v445 = vrot.slane %v443, 4
        %v447 = vadd.f32 %v440, %v445
        %s448 = sld [smem:[#allocation7 + $0x281]]
        %v449 = vstv %s448
        %v450 = vmul.f32 %v449, %v360
        %v452 = vrot.slane %v450, 5
        %v454 = vadd.f32 %v447, %v452
        %s455 = sld [smem:[#allocation7 + $0x301]]
        %v456 = vstv %s455
        %v457 = vmul.f32 %v456, %v360
        %v459 = vrot.slane %v457, 6
        %v461 = vadd.f32 %v454, %v459
        %s462 = sld [smem:[#allocation7 + $0x381]]
        %v463 = vstv %s462
        %v464 = vmul.f32 %v463, %v360
        %v466 = vrot.slane %v464, 7
        %v468 = vadd.f32 %v461, %v466
        %s469 = sld [smem:[#allocation8 + $0x1]]
        %v470 = vstv %s469
        %v471 = vadd.f32 %v468, %v470
        %v472 = vmax.f32 %v471, 0.0
        %s473 = sld [smem:[#allocation7 + $0x2]]
        %v474 = vstv %s473
        %v475 = vmul.f32 %v474, %v360
        %s476 = sld [smem:[#allocation7 + $0x82]]
        %v477 = vstv %s476
        %v478 = vmul.f32 %v477, %v360
        %v480 = vrot.slane %v478, 1
        %v482 = vadd.f32 %v475, %v480
        %s483 = sld [smem:[#allocation7 + $0x102]]
        %v484 = vstv %s483
        %v485 = vmul.f32 %v484, %v360
        %v487 = vrot.slane %v485, 2
        %v489 = vadd.f32 %v482, %v487
        %s490 = sld [smem:[#allocation7 + $0x182]]
        %v491 = vstv %s490
        %v492 = vmul.f32 %v491, %v360
        %v494 = vrot.slane %v492, 3
        %v496 = vadd.f32 %v489, %v494
        %s497 = sld [smem:[#allocation7 + $0x202]]
        %v498 = vstv %s497
        %v499 = vmul.f32 %v498, %v360
        %v501 = vrot.slane %v499, 4
        %v503 = vadd.f32 %v496, %v501
        %s504 = sld [smem:[#allocation7 + $0x282]]
        %v505 = vstv %s504
        %v506 = vmul.f32 %v505, %v360
        %v508 = vrot.slane %v506, 5
        %v510 = vadd.f32 %v503, %v508
        %s511 = sld [smem:[#allocation7 + $0x302]]
        %v512 = vstv %s511
        %v513 = vmul.f32 %v512, %v360
        %v515 = vrot.slane %v513, 6
        %v517 = vadd.f32 %v510, %v515
        %s518 = sld [smem:[#allocation7 + $0x382]]
        %v519 = vstv %s518
        %v520 = vmul.f32 %v519, %v360
        %v522 = vrot.slane %v520, 7
        %v524 = vadd.f32 %v517, %v522
        %s525 = sld [smem:[#allocation8 + $0x2]]
        %v526 = vstv %s525
        %v527 = vadd.f32 %v524, %v526
        %v528 = vmax.f32 %v527, 0.0
        %s529 = sld [smem:[#allocation7 + $0x3]]
        %v530 = vstv %s529
        %v531 = vmul.f32 %v530, %v360
        %s532 = sld [smem:[#allocation7 + $0x83]]
        %v533 = vstv %s532
        %v534 = vmul.f32 %v533, %v360
        %v536 = vrot.slane %v534, 1
        %v538 = vadd.f32 %v531, %v536
        %s539 = sld [smem:[#allocation7 + $0x103]]
        %v540 = vstv %s539
        %v541 = vmul.f32 %v540, %v360
        %v543 = vrot.slane %v541, 2
        %v545 = vadd.f32 %v538, %v543
        %s546 = sld [smem:[#allocation7 + $0x183]]
        %v547 = vstv %s546
        %v548 = vmul.f32 %v547, %v360
        %v550 = vrot.slane %v548, 3
        %v552 = vadd.f32 %v545, %v550
        %s553 = sld [smem:[#allocation7 + $0x203]]
        %v554 = vstv %s553
        %v555 = vmul.f32 %v554, %v360
        %v557 = vrot.slane %v555, 4
        %v559 = vadd.f32 %v552, %v557
        %s560 = sld [smem:[#allocation7 + $0x283]]
        %v561 = vstv %s560
        %v562 = vmul.f32 %v561, %v360
        %v564 = vrot.slane %v562, 5
        %v566 = vadd.f32 %v559, %v564
        %s567 = sld [smem:[#allocation7 + $0x303]]
        %v568 = vstv %s567
        %v569 = vmul.f32 %v568, %v360
        %v571 = vrot.slane %v569, 6
        %v573 = vadd.f32 %v566, %v571
        %s574 = sld [smem:[#allocation7 + $0x383]]
        %v575 = vstv %s574
        %v576 = vmul.f32 %v575, %v360
        %v578 = vrot.slane %v576, 7
        %v580 = vadd.f32 %v573, %v578
        %s581 = sld [smem:[#allocation8 + $0x3]]
        %v582 = vstv %s581
        %v583 = vadd.f32 %v580, %v582
        %v584 = vmax.f32 %v583, 0.0
        %s585 = sld [smem:[#allocation7 + $0x4]]
        %v586 = vstv %s585
        %v587 = vmul.f32 %v586, %v360
        %s588 = sld [smem:[#allocation7 + $0x84]]
        %v589 = vstv %s588
        %v590 = vmul.f32 %v589, %v360
        %v592 = vrot.slane %v590, 1
        %v594 = vadd.f32 %v587, %v592
        %s595 = sld [smem:[#allocation7 + $0x104]]
        %v596 = vstv %s595
        %v597 = vmul.f32 %v596, %v360
        %v599 = vrot.slane %v597, 2
        %v601 = vadd.f32 %v594, %v599
        %s602 = sld [smem:[#allocation7 + $0x184]]
        %v603 = vstv %s602
        %v604 = vmul.f32 %v603, %v360
        %v606 = vrot.slane %v604, 3
        %v608 = vadd.f32 %v601, %v606
        %s609 = sld [smem:[#allocation7 + $0x204]]
        %v610 = vstv %s609
        %v611 = vmul.f32 %v610, %v360
        %v613 = vrot.slane %v611, 4
        %v615 = vadd.f32 %v608, %v613
        %s616 = sld [smem:[#allocation7 + $0x284]]
        %v617 = vstv %s616
        %v618 = vmul.f32 %v617, %v360
        %v620 = vrot.slane %v618, 5
        %v622 = vadd.f32 %v615, %v620
        %s623 = sld [smem:[#allocation7 + $0x304]]
        %v624 = vstv %s623
        %v625 = vmul.f32 %v624, %v360
        %v627 = vrot.slane %v625, 6
        %v629 = vadd.f32 %v622, %v627
        %s630 = sld [smem:[#allocation7 + $0x384]]
        %v631 = vstv %s630
        %v632 = vmul.f32 %v631, %v360
        %v634 = vrot.slane %v632, 7
        %v636 = vadd.f32 %v629, %v634
        %s637 = sld [smem:[#allocation8 + $0x4]]
        %v638 = vstv %s637
        %v639 = vadd.f32 %v636, %v638
        %v640 = vmax.f32 %v639, 0.0
        %s641 = sld [smem:[#allocation10]]
        %v642 = vstv %s641
        %v643 = vmul.f32 %v642, %v416
        %s644 = sld [smem:[#allocation10 + $0x80]]
        %v645 = vstv %s644
        %v646 = vmul.f32 %v645, %v472
        %v647 = vadd.f32 %v643, %v646
        %s648 = sld [smem:[#allocation10 + $0x100]]
        %v649 = vstv %s648
        %v650 = vmul.f32 %v649, %v528
        %v651 = vadd.f32 %v647, %v650
        %s652 = sld [smem:[#allocation10 + $0x180]]
        %v653 = vstv %s652
        %v654 = vmul.f32 %v653, %v584
        %v655 = vadd.f32 %v651, %v654
        %s656 = sld [smem:[#allocation10 + $0x200]]
        %v657 = vstv %s656
        %v658 = vmul.f32 %v657, %v640
        %v659 = vadd.f32 %v655, %v658
        %s660 = sld [smem:[#allocation11]]
        %v661 = vstv %s660
        %v662 = vadd.f32 %v659, %v661
        %v663 = vmax.f32 %v662, 0.0
        %s664 = sld [smem:[#allocation10 + $0x1]]
        %v665 = vstv %s664
        %v666 = vmul.f32 %v665, %v416
        %s667 = sld [smem:[#allocation10 + $0x81]]
        %v668 = vstv %s667
        %v669 = vmul.f32 %v668, %v472
        %v670 = vadd.f32 %v666, %v669
        %s671 = sld [smem:[#allocation10 + $0x101]]
        %v672 = vstv %s671
        %v673 = vmul.f32 %v672, %v528
        %v674 = vadd.f32 %v670, %v673
        %s675 = sld [smem:[#allocation10 + $0x181]]
        %v676 = vstv %s675
        %v677 = vmul.f32 %v676, %v584
        %v678 = vadd.f32 %v674, %v677
        %s679 = sld [smem:[#allocation10 + $0x201]]
        %v680 = vstv %s679
        %v681 = vmul.f32 %v680, %v640
        %v682 = vadd.f32 %v678, %v681
        %s683 = sld [smem:[#allocation11 + $0x1]]
        %v684 = vstv %s683
        %v685 = vadd.f32 %v682, %v684
        %v686 = vmax.f32 %v685, 0.0
        %s687 = sld [smem:[#allocation10 + $0x2]]
        %v688 = vstv %s687
        %v689 = vmul.f32 %v688, %v416
        %s690 = sld [smem:[#allocation10 + $0x82]]
        %v691 = vstv %s690
        %v692 = vmul.f32 %v691, %v472
        %v693 = vadd.f32 %v689, %v692
        %s694 = sld [smem:[#allocation10 + $0x102]]
        %v695 = vstv %s694
        %v696 = vmul.f32 %v695, %v528
        %v697 = vadd.f32 %v693, %v696
        %s698 = sld [smem:[#allocation10 + $0x182]]
        %v699 = vstv %s698
        %v700 = vmul.f32 %v699, %v584
        %v701 = vadd.f32 %v697, %v700
        %s702 = sld [smem:[#allocation10 + $0x202]]
        %v703 = vstv %s702
        %v704 = vmul.f32 %v703, %v640
        %v705 = vadd.f32 %v701, %v704
        %s706 = sld [smem:[#allocation11 + $0x2]]
        %v707 = vstv %s706
        %v708 = vadd.f32 %v705, %v707
        %v709 = vmax.f32 %v708, 0.0
        %s710 = sld [smem:[#allocation13]]
        %v711 = vstv %s710
        %v712 = vmul.f32 %v711, %v663
        %s713 = sld [smem:[#allocation13 + $0x80]]
        %v714 = vstv %s713
        %v715 = vmul.f32 %v714, %v686
        %v716 = vadd.f32 %v712, %v715
        %s717 = sld [smem:[#allocation13 + $0x100]]
        %v718 = vstv %s717
        %v719 = vmul.f32 %v718, %v709
        %v720 = vadd.f32 %v716, %v719
        %s721 = sld [smem:[#allocation2]]
        %v722 = vstv %s721
        %v723 = vadd.f32 %v720, %v722
        %v724 = vsub.f32 0.0, %v723
        %v725 = vmul.f32 %v724, 1.442695
        %v726 = vpow.pop %v725
        %v727 = vadd.f32 %v726, 1.0
        %v728 = vrcp.pop %v727
        %729 = vst [vmem:[%s359] sm:$0x1] %v728
        %s730 = sand.u32 %s188, 1
        %s731 = scalar_lea.sflag [#allocation5], %s730
        %s732 = sand.u32 %s188, 1
        %s733 = scalar_lea.vmem [#allocation14], %s732
        // Predicated region
        $region73: #{tpu_custom_call.1} parent=47 // pred_check
          %p734 = pneg %p198
        $region74: #{tpu_custom_call.1} parent=47 // pred_check_branch
          %736 = sbr.rel (%p734) target = $region76
        $region75: #{tpu_custom_call.1} parent=47 // pred_region
          %738 = vsyncadd %s731, 0
          %s739 = scalar_lea.hbm %s7, %s28
          %s741 = sshll.u32 %s733, 4
          %s742 = int_to_ptr.vmem [resolvable:$true] %s741
          %s743 = sshll.u32 %s739, 4
          %s744 = int_to_ptr.hbm [resolvable:$true] %s743
          %746 = dma.vmem_to_hbm [thread:$0]  %s742, 16, %s744, %s731
        $region76: #{tpu_custom_call.1} parent=47 // pred_fallthru
          _
      $region48: #{tpu_custom_call.1} parent=5 // pred_fallthru
        _
      %p747 = scmp.le.s32.totalorder 2, %s23
      // Predicated region
      $region77: #{tpu_custom_call.1} parent=5 // pred_check
        %p748 = pneg %p747
      $region78: #{tpu_custom_call.1} parent=5 // pred_check_branch
        %750 = sbr.rel (%p748) target = $region80
      $region79: #{tpu_custom_call.1} parent=5 // pred_region
        %s751 = ssub.s32 %s23, 2
        // Predicated region
        $region81: #{tpu_custom_call.1} parent=79 // pred_check
          %p752 = pneg %p204
        $region82: #{tpu_custom_call.1} parent=79 // pred_check_branch
          %754 = sbr.rel (%p752) target = $region84
        $region83: #{tpu_custom_call.1} parent=79 // pred_region
          %s755 = sand.u32 %s189, 1
          %s756 = scalar_lea.sflag [#allocation5], %s755
          %s757 = sand.u32 %s189, 1
          %s758 = scalar_lea.vmem [#allocation14], %s757
          %760 = dma.done %s756, 16
        $region84: #{tpu_custom_call.1} parent=79 // pred_fallthru
          _
      $region80: #{tpu_custom_call.1} parent=5 // pred_fallthru
        _
    $region6: #{tpu_custom_call.1} parent=1 // loop_footer
      %s27 = sadd.s32 1, %s23
    $region7: #{tpu_custom_call.1} parent=1 // loop_footer_branch
      %22 = sbr.rel target = $region3
    $region8: #{tpu_custom_call.1} parent=1 // loop_exit
      _
    %761 = vsyncpa [#allocation4], 1
    %s762 = scalar_lea.sflag [#allocation4], 1
    %763 = vsyncpa %s762, 1
    %764 = vsyncpa [#allocation5], 1
    %s765 = scalar_lea.sflag [#allocation5], 1
    %766 = vsyncpa %s765, 1
    %767 = vsyncpa [#allocation6], 1
    %s768 = scalar_lea.sflag [#allocation6], 1
    %769 = vsyncpa %s768, 1
    %770 = vsyncpa [#allocation9], 1
    %771 = vsyncpa [#allocation12], 1

</llo_original>
